<compile_context>
chip_gen: v5e
topology: v5e:2x2
jax: 0.10.0
libtpu: 0.0.40
codegen_flags: <defaults>
</compile_context>

<pallas_src>
import functools

import jax
import jax.numpy as jnp
from jax import lax
from jax.experimental import pallas as pl
from jax.experimental.pallas import tpu as pltpu

LN_EPS = 1e-5


def _round_up(x, m):
    return ((x + m - 1) // m) * m


def _decoder_emb_kernel(ids_ref, table_ref, gamma_ref, beta_ref, out_ref,
                        emb_ref, *, hidden_dim, token_block):
    """One grid step: gather `token_block` rows from the VMEM-resident fused
    table (dynamic row reads driven by SMEM ids), then LayerNorm + affine."""
    base = pl.program_id(0) * token_block
    vtot = table_ref.shape[0]

    def gather_row(j, carry):
        idx = ids_ref[base + j]
        # Clamp so pad / garbage ids can never trigger an OOB VMEM read
        # (VMEM refs have no runtime bounds check).
        idx = jnp.clip(idx, 0, vtot - 1)
        emb_ref[pl.ds(j, 1), :] = table_ref[pl.ds(idx, 1), :]
        return carry

    lax.fori_loop(0, token_block, gather_row, 0)

    emb = emb_ref[...].astype(jnp.float32)                    # (TM, Hp)

    # LayerNorm over the real hidden dim.  Padded table / gamma / beta lanes
    # are exactly zero, so plain lane sums already equal sums over the valid
    # lanes; E[x^2] - mean^2 removes the need for any lane-validity mask.
    inv_h = jnp.float32(1.0 / hidden_dim)
    mean = jnp.sum(emb, axis=-1, keepdims=True) * inv_h
    var = jnp.sum(emb * emb, axis=-1, keepdims=True) * inv_h - mean * mean
    normed = (emb - mean) * lax.rsqrt(var + LN_EPS)
    out_ref[...] = (normed * gamma_ref[...] + beta_ref[...]).astype(out_ref.dtype)

    # TODO(synk): dropout is identity here (eval semantics); training-mode
    # dropout would need pltpu.prng_seed / pltpu.prng_random_bits.


def prepare_decoder_embedding_params(w_word, w_prompt, gamma, beta, *,
                                     table_dtype=None):
    """One-time (param-load) fusion of [word; prompt] tables + lane padding.

    Hoisted out of the forward path so the full table is not re-read /
    re-written in HBM on every call.
    """
    V, H = w_word.shape
    IV = w_prompt.shape[0]
    h_pad = _round_up(H, 128)
    v_pad = _round_up(V + IV, 8)

    table = jnp.concatenate([w_word, w_prompt], axis=0)
    if table_dtype is not None:
        table = table.astype(table_dtype)
    table = jnp.pad(table, ((0, v_pad - (V + IV)), (0, h_pad - H)))

    gamma2 = jnp.pad(gamma.astype(jnp.float32).reshape(1, H),
                     ((0, 0), (0, h_pad - H)))
    beta2 = jnp.pad(beta.astype(jnp.float32).reshape(1, H),
                    ((0, 0), (0, h_pad - H)))
    return dict(table=table, gamma=gamma2, beta=beta2, hidden_dim=H,
                vocab_size=V, instruct_vocab_size=IV)


def _vmem_capacity_bytes():
    cap = None
    try:
        cap = getattr(pltpu.get_tpu_info(), "vmem_capacity_bytes", None)
    except Exception:
        cap = None
    # Fallback: most conservative physical VMEM across generations (v7x).
    return int(cap) if cap else (64 << 20)


def decoder_embeddings_forward(x, params, *, token_block=256, out_dtype=None):
    """x: (B, S) int ids; returns (B, S, H) in `out_dtype` (default = table dtype).

    token_block=256 suits v6e/v7x; it is shrunk automatically so the grid has
    >= 2 blocks (v7x dual TensorCore) and small inputs are not over-padded.
    """
    table, gamma2, beta2 = params["table"], params["gamma"], params["beta"]
    H = params["hidden_dim"]
    vtot, h_pad = table.shape
    if out_dtype is None:
        out_dtype = table.dtype

    B, S = x.shape
    N = B * S

    # Shrink token_block so there are >= 2 grid blocks (megacore sharding)
    # and padding stays bounded; keep it a multiple of 8 (sublane).
    tb = int(min(token_block, max(8, _round_up(pl.cdiv(N, 2), 8))))
    n_blocks = pl.cdiv(N, tb)
    n_pad = n_blocks * tb

    ids_flat = x.reshape(N).astype(jnp.int32)
    if n_pad != N:
        ids_flat = jnp.pad(ids_flat, (0, n_pad - N))

    # VMEM budget: single-buffered resident table (untiled) + double-buffered
    # output tiles + gather scratch + LN params.
    tab_item = jnp.dtype(table.dtype).itemsize
    out_item = jnp.dtype(out_dtype).itemsize
    vmem_needed = (vtot * h_pad * tab_item          # fused table  x1
                   + 2 * tb * h_pad * out_item      # out tile     x2
                   + tb * h_pad * tab_item          # gather scratch
                   + 4 * h_pad * 4)                 # gamma / beta
    vmem_cap = (_vmem_capacity_bytes() * 3) // 4    # ~25% headroom
    if vmem_needed + (2 << 20) > vmem_cap:
        # TODO(synk): HBM-resident table + per-row DMA gather for huge vocabs.
        raise NotImplementedError(
            "fused embedding table does not fit the VMEM budget; "
            "HBM DMA-gather path not implemented")
    vmem_limit = int(min(max(vmem_needed + (2 << 20), 16 << 20), vmem_cap))

    kernel = functools.partial(_decoder_emb_kernel, hidden_dim=H,
                               token_block=tb)

    out_flat = pl.pallas_call(
        kernel,
        out_shape=jax.ShapeDtypeStruct((n_pad, h_pad), out_dtype),
        grid_spec=pltpu.PrefetchScalarGridSpec(
            num_scalar_prefetch=1,                  # ids -> SMEM
            grid=(n_blocks,),
            in_specs=[
                # Whole fused table resident in VMEM: one copy, one buffer,
                # no per-grid-step DMA.
                pl.BlockSpec(memory_space=pltpu.MemorySpace.VMEM),
                pl.BlockSpec(memory_space=pltpu.MemorySpace.VMEM),  # gamma
                pl.BlockSpec(memory_space=pltpu.MemorySpace.VMEM),  # beta
            ],
            out_specs=pl.BlockSpec((tb, h_pad), lambda i, ids: (i, 0)),
            scratch_shapes=[pltpu.VMEM((tb, h_pad), table.dtype)],
        ),
        compiler_params=pltpu.CompilerParams(
            dimension_semantics=("parallel",),
            vmem_limit_bytes=vmem_limit),
    )(ids_flat, table, gamma2, beta2)

    return out_flat[:N, :H].reshape(B, S, H)


def _reference(x, w_word, w_prompt, gamma, beta):
    V = w_word.shape[0]
    is_word = x < V
    word_e = jnp.take(w_word, jnp.clip(x, 0, V - 1), axis=0)
    prompt_e = jnp.take(w_prompt,
                        jnp.clip(x - V, 0, w_prompt.shape[0] - 1), axis=0)
    emb = jnp.where(is_word[..., None], word_e, prompt_e).astype(jnp.float32)
    mean = jnp.mean(emb, axis=-1, keepdims=True)
    var = jnp.mean((emb - mean) ** 2, axis=-1, keepdims=True)
    normed = (emb - mean) * lax.rsqrt(var + LN_EPS)
    return normed * gamma + beta


if __name__ == "__main__":
    # Small deterministic config.
    B, S = 2, 8
    vocab_size = 16
    instruct_vocab_size = 8
    hidden_dim = 32

    key = jax.random.PRNGKey(0)
    k1, k2, k3, k4, k5 = jax.random.split(key, 5)

    w_word = jax.random.normal(k1, (vocab_size, hidden_dim), jnp.float32)
    w_prompt = jax.random.normal(k2, (instruct_vocab_size, hidden_dim),
                                 jnp.float32)
    gamma = 1.0 + 0.1 * jax.random.normal(k3, (hidden_dim,), jnp.float32)
    beta = 0.1 * jax.random.normal(k4, (hidden_dim,), jnp.float32)

    # Token ids spanning both word ids [0, V) and prompt ids [V, V+IV).
    x = jax.random.randint(k5, (B, S), 0,
                           vocab_size + instruct_vocab_size, jnp.int32)

    # One-time parameter fusion (hoisted out of the forward path).
    params = prepare_decoder_embedding_params(w_word, w_prompt, gamma, beta)

    out = decoder_embeddings_forward(x, params)
    out = jax.block_until_ready(out)

    ref = _reference(x, w_word, w_prompt, gamma, beta)
    assert out.shape == (B, S, hidden_dim)
    assert jnp.allclose(out, ref, atol=1e-4, rtol=1e-4), "mismatch vs reference"

    print("KERNEL_OK")
</pallas_src>

<mosaic_0001>
module attributes {stable_mosaic.version = 11 : i64} {
  func.func @_decoder_emb_kernel(%arg0: i32, %arg1: memref<16xi32, #tpu.memory_space<smem>>, %arg2: memref<24x128xf32, #tpu.memory_space<vmem>>, %arg3: memref<1x128xf32, #tpu.memory_space<vmem>>, %arg4: memref<1x128xf32, #tpu.memory_space<vmem>>, %arg5: memref<8x128xf32, #tpu.memory_space<vmem>>, %arg6: memref<8x128xf32, #tpu.memory_space<vmem>>) attributes {dimension_semantics = [#tpu.dimension_semantics<parallel>], iteration_bounds = array<i64: 2>, scalar_prefetch = 1 : i64, scratch_operands = 1 : i64, tpu.core_type = #tpu.core_type<tc>, window_params = [{pipeline_mode = #tpu.pipeline_mode<synchronous>, transform_indices = @transform_0, window_bounds = array<i64: 24, 128>}, {pipeline_mode = #tpu.pipeline_mode<synchronous>, transform_indices = @transform_1, window_bounds = array<i64: 1, 128>}, {pipeline_mode = #tpu.pipeline_mode<synchronous>, transform_indices = @transform_2, window_bounds = array<i64: 1, 128>}, {transform_indices = @transform_3, window_bounds = array<i64: 8, 128>}]} {
    %c8_i32 = arith.constant 8 : i32
    %0 = arith.muli %arg0, %c8_i32 : i32
    %c0_i32 = arith.constant 0 : i32
    %c8_i32_0 = arith.constant 8 : i32
    %1 = arith.addi %c0_i32, %c8_i32_0 : i32
    %c1_i32 = arith.constant 1 : i32
    scf.for %arg7 = %c0_i32 to %1 step %c1_i32  : i32 {
      %28 = arith.addi %0, %arg7 : i32
      %29 = arith.index_cast %28 : i32 to index
      %30 = memref.load %arg1[%29] : memref<16xi32, #tpu.memory_space<smem>>
      %c0_i32_13 = arith.constant 0 : i32
      %c23_i32 = arith.constant 23 : i32
      %31 = arith.maxsi %c0_i32_13, %30 : i32
      %32 = arith.minsi %c23_i32, %31 : i32
      %33 = arith.index_cast %32 : i32 to index
      %c0_14 = arith.constant 0 : index
      %34 = vector.load %arg2[%33, %c0_14] : memref<24x128xf32, #tpu.memory_space<vmem>>, vector<1x128xf32>
      %35 = arith.index_cast %arg7 : i32 to index
      %c0_15 = arith.constant 0 : index
      %36 = vector.load %arg6[%35, %c0_15] : memref<8x128xf32, #tpu.memory_space<vmem>>, vector<1x128xf32>
      tpu.vector_store %arg6[%35, %c0_15], %34 {strides = array<i32>} : memref<8x128xf32, #tpu.memory_space<vmem>>, vector<1x128xf32>,
    }
    %c8_i32_1 = arith.constant 8 : i32
    %c0 = arith.constant 0 : index
    %c0_2 = arith.constant 0 : index
    %2 = vector.load %arg6[%c0, %c0_2] : memref<8x128xf32, #tpu.memory_space<vmem>>, vector<8x128xf32>
    %cst = arith.constant dense<0.000000e+00> : vector<8xf32>
    %3 = vector.multi_reduction <add>, %2, %cst [1] : vector<8x128xf32> to vector<8xf32>
    %4 = vector.shape_cast %3 : vector<8xf32> to vector<8x1xf32>
    %cst_3 = arith.constant 3.125000e-02 : f32
    %5 = vector.broadcast %cst_3 : f32 to vector<8x1xf32>
    %6 = arith.mulf %4, %5 : vector<8x1xf32>
    %7 = arith.mulf %2, %2 : vector<8x128xf32>
    %cst_4 = arith.constant dense<0.000000e+00> : vector<8xf32>
    %8 = vector.multi_reduction <add>, %7, %cst_4 [1] : vector<8x128xf32> to vector<8xf32>
    %9 = vector.shape_cast %8 : vector<8xf32> to vector<8x1xf32>
    %cst_5 = arith.constant 3.125000e-02 : f32
    %10 = vector.broadcast %cst_5 : f32 to vector<8x1xf32>
    %11 = arith.mulf %9, %10 : vector<8x1xf32>
    %12 = arith.mulf %6, %6 : vector<8x1xf32>
    %13 = arith.subf %11, %12 : vector<8x1xf32>
    %14 = vector.broadcast %6 : vector<8x1xf32> to vector<8x128xf32>
    %15 = arith.subf %2, %14 : vector<8x128xf32>
    %cst_6 = arith.constant 9.99999974E-6 : f32
    %16 = vector.broadcast %cst_6 : f32 to vector<8x1xf32>
    %17 = arith.addf %13, %16 : vector<8x1xf32>
    %18 = math.rsqrt %17 : vector<8x1xf32>
    %19 = vector.broadcast %18 : vector<8x1xf32> to vector<8x128xf32>
    %20 = arith.mulf %15, %19 : vector<8x128xf32>
    %c0_7 = arith.constant 0 : index
    %c0_8 = arith.constant 0 : index
    %21 = vector.load %arg3[%c0_7, %c0_8] : memref<1x128xf32, #tpu.memory_space<vmem>>, vector<1x128xf32>
    %22 = vector.broadcast %21 : vector<1x128xf32> to vector<8x128xf32>
    %23 = arith.mulf %20, %22 : vector<8x128xf32>
    %c0_9 = arith.constant 0 : index
    %c0_10 = arith.constant 0 : index
    %24 = vector.load %arg4[%c0_9, %c0_10] : memref<1x128xf32, #tpu.memory_space<vmem>>, vector<1x128xf32>
    %25 = vector.broadcast %24 : vector<1x128xf32> to vector<8x128xf32>
    %26 = arith.addf %23, %25 : vector<8x128xf32>
    %c0_11 = arith.constant 0 : index
    %c0_12 = arith.constant 0 : index
    %27 = vector.load %arg5[%c0_11, %c0_12] : memref<8x128xf32, #tpu.memory_space<vmem>>, vector<8x128xf32>
    tpu.vector_store %arg5[%c0_11, %c0_12], %26 {strides = array<i32>} : memref<8x128xf32, #tpu.memory_space<vmem>>, vector<8x128xf32>,
    return
  }
  func.func @transform_0(%arg0: i32, %arg1: memref<16xi32, #tpu.memory_space<smem>>) -> (i32, i32) {
    %c0_i32 = arith.constant 0 : i32
    %c0_i32_0 = arith.constant 0 : i32
    %c0_i32_1 = arith.constant 0 : i32
    return %c0_i32, %c0_i32_0 : i32, i32
  }
  func.func @transform_1(%arg0: i32, %arg1: memref<16xi32, #tpu.memory_space<smem>>) -> (i32, i32) {
    %c0_i32 = arith.constant 0 : i32
    %c0_i32_0 = arith.constant 0 : i32
    %c0_i32_1 = arith.constant 0 : i32
    return %c0_i32, %c0_i32_0 : i32, i32
  }
  func.func @transform_2(%arg0: i32, %arg1: memref<16xi32, #tpu.memory_space<smem>>) -> (i32, i32) {
    %c0_i32 = arith.constant 0 : i32
    %c0_i32_0 = arith.constant 0 : i32
    %c0_i32_1 = arith.constant 0 : i32
    return %c0_i32, %c0_i32_0 : i32, i32
  }
  func.func @transform_3(%arg0: i32, %arg1: memref<16xi32, #tpu.memory_space<smem>>) -> (i32, i32) {
    %c0_i32 = arith.constant 0 : i32
    %c0_i32_0 = arith.constant 0 : i32
    return %arg0, %c0_i32 : i32, i32
  }
}

</mosaic_0001>

<llo_original>
// kernel: tpu_custom_call.1
$region0: #{tpu_custom_call.1}
  #allocation0 [shape = 'u32[]', space=smem, size = 0x4, offset = 0x4, fixed_abs, tag = 'smem constant byte address 0x4 - core index']
  #allocation1 [shape = 'u32[72,128]{1,0:T(1,128)}', space=vmem, size = 0x9000, scoped, tag = 'internal scratch']
  #allocation2 [shape = 'f32[8,128]{1,0:T(8,128)}', space=vmem, size = 0x1000, scoped, tag = 'scratch operand']
  #allocation3 [shape = 's32[1]{0}', space=sflag, size = 0x4, scoped, tag = 'scoped memory for tpu_custom_call.1']
  #allocation4 [shape = 'u8[512]{0}', space=smem, size = 0x200, scoped, tag = 'prefetched SMEM operand 0']
  %s0 = inlined_call_operand.hbm [shape: s32[16], index: 0, kind: input, shape index: {}]
  %s1 = inlined_call_operand.hbm [shape: f32[24,128], index: 1, kind: input, shape index: {}]
  %s2 = inlined_call_operand.vmem [shape: f32[1,128], index: 2, kind: input, shape index: {}]
  %s3 = inlined_call_operand.vmem [shape: f32[1,128], index: 3, kind: input, shape index: {}]
  %s4 = inlined_call_operand.hbm [shape: f32[16,128], index: 4, kind: output, shape index: {}]
  %s5 = sld [smem:[#allocation0]]
  $region56: #{tpu_custom_call.1} parent=0
    _
  %s7 = ssub.s32 1, %s5
  %s8 = scalar_select 0, %s7, %s5
  %s10 = sshll.u32 %s0, 4
  %s11 = int_to_ptr.hbm [resolvable:$true] %s10
  %13 = dma.hbm_to_smem %s11, 16, [#allocation4], [#allocation3]
  %15 = dma.done [#allocation3], 16
  %16 = sfence
  $region1: #{tpu_custom_call.1} parent=0
    #allocation5 [shape = 'u8[12288]{0}', space=vmem, size = 0x3000, scoped, tag = 'input window, operand 1, single buffered']
    #allocation6 [shape = 's32[2]{0}', space=sflag, size = 0x8, scoped, tag = 'scoped memory for tpu_custom_call.1']
    #allocation7 [shape = 's32[2]{0}', space=sflag, size = 0x8, scoped, tag = 'scoped memory for tpu_custom_call.1']
    #allocation8 [shape = 'u8[8192]{0}', space=vmem, size = 0x2000, scoped, tag = 'output window, operand 0']
    %17 = vsyncpa [#allocation6], 0
    %18 = vsyncpa [#allocation7], 0
    %s19 = scalar_lea.sflag [#allocation7], 1
    %20 = vsyncpa %s19, 0
    loop: start=0, step=1, limit=4
    $region2: #{tpu_custom_call.1} parent=1 // loop_pre_header
      _
    $region3: #{tpu_custom_call.1} parent=1 // loop_header
      %s22 = sphi 0, %s26
      %p23 = scmp.ge.s32.totalorder %s22, 4
      %s30 = sphi 0, %s30
      %s32 = sphi 0, %s30
      %s33 = sphi 0, %s32
      %s47 = sphi 0, %s33
      %s51 = sphi 0, %s51
      %s53 = sphi 0, %s51
      %s54 = sphi 0, %s53
      %s68 = sphi 0, %s54
      %s72 = sphi 0, %s72
      %s74 = sphi 0, %s72
      %s75 = sphi 0, %s74
      %s89 = sphi 0, %s75
      %s95 = sphi 0, %s97
      %s98 = sphi 0, %s95
      %s99 = sphi 0, %s98
      %s115 = sphi 0, %s99
    $region4: #{tpu_custom_call.1} parent=1 // loop_header_branch
      %25 = sbr.rel (%p23) target = $region8
    $region5: #{tpu_custom_call.1} parent=1 // loop_body
      %s27 = ssub.s32 %s22, 1
      %s28 = ssub.s32 %s22, 2
      %s29 = sadd.s32 %s22, 1
      %s31 = sadd.s32 %s30, 1
      %p34 = scmp.eq.s32.totalorder %s22, 1
      %p35 = scmp.ne.s32.totalorder %s30, %s32
      %p36 = scmp.eq.s32.totalorder %s22, 0
      %p37 = por %p35, %p36
      %p38 = scmp.ne.s32.totalorder %s30, %s32
      %p39 = scmp.eq.s32.totalorder %s27, 1
      %p40 = por %p38, %p39
      %p41 = scmp.ne.s32.totalorder %s32, %s33
      %p42 = scmp.eq.s32.totalorder %s27, 0
      %p43 = por %p41, %p42
      %p44 = scmp.ne.s32.totalorder %s32, %s33
      %p45 = scmp.eq.s32.totalorder %s28, 1
      %p46 = por %p44, %p45
      %p48 = scmp.ne.s32.totalorder %s33, %s47
      %p49 = scmp.eq.s32.totalorder %s28, 0
      %p50 = por %p48, %p49
      %s52 = sadd.s32 %s51, 1
      %p55 = scmp.eq.s32.totalorder %s22, 1
      %p56 = scmp.ne.s32.totalorder %s51, %s53
      %p57 = scmp.eq.s32.totalorder %s22, 0
      %p58 = por %p56, %p57
      %p59 = scmp.ne.s32.totalorder %s51, %s53
      %p60 = scmp.eq.s32.totalorder %s27, 1
      %p61 = por %p59, %p60
      %p62 = scmp.ne.s32.totalorder %s53, %s54
      %p63 = scmp.eq.s32.totalorder %s27, 0
      %p64 = por %p62, %p63
      %p65 = scmp.ne.s32.totalorder %s53, %s54
      %p66 = scmp.eq.s32.totalorder %s28, 1
      %p67 = por %p65, %p66
      %p69 = scmp.ne.s32.totalorder %s54, %s68
      %p70 = scmp.eq.s32.totalorder %s28, 0
      %p71 = por %p69, %p70
      %s73 = sadd.s32 %s72, 1
      %p76 = scmp.eq.s32.totalorder %s22, 1
      %p77 = scmp.ne.s32.totalorder %s72, %s74
      %p78 = scmp.eq.s32.totalorder %s22, 0
      %p79 = por %p77, %p78
      %p80 = scmp.ne.s32.totalorder %s72, %s74
      %p81 = scmp.eq.s32.totalorder %s27, 1
      %p82 = por %p80, %p81
      %p83 = scmp.ne.s32.totalorder %s74, %s75
      %p84 = scmp.eq.s32.totalorder %s27, 0
      %p85 = por %p83, %p84
      %p86 = scmp.ne.s32.totalorder %s74, %s75
      %p87 = scmp.eq.s32.totalorder %s28, 1
      %p88 = por %p86, %p87
      %p90 = scmp.ne.s32.totalorder %s75, %s89
      %p91 = scmp.eq.s32.totalorder %s28, 0
      %p92 = por %p90, %p91
      %s93 = ssub.s32 %s22, %s29
      %p94 = scmp.eq.s32.totalorder %s93, 0
      %s96 = sadd.s32 %s95, 1
      %s97 = scalar_select %p94, %s95, %s96
      %p100 = pneg %p94
      %p101 = scmp.eq.s32.totalorder %s22, 1
      %p102 = por %p100, %p101
      %p103 = scmp.ne.s32.totalorder %s95, %s98
      %p104 = scmp.eq.s32.totalorder %s22, 0
      %p105 = por %p103, %p104
      %p106 = scmp.ne.s32.totalorder %s95, %s98
      %p107 = scmp.eq.s32.totalorder %s27, 1
      %p108 = por %p106, %p107
      %p109 = scmp.ne.s32.totalorder %s98, %s99
      %p110 = scmp.eq.s32.totalorder %s27, 0
      %p111 = por %p109, %p110
      %p112 = scmp.ne.s32.totalorder %s98, %s99
      %p113 = scmp.eq.s32.totalorder %s28, 1
      %p114 = por %p112, %p113
      %p116 = scmp.ne.s32.totalorder %s99, %s115
      %p117 = scmp.eq.s32.totalorder %s28, 0
      %p118 = por %p116, %p117
      %p119 = scmp.le.s32.totalorder 1, %s22
      %p120 = scmp.lt.s32.totalorder %s22, 3
      %p121 = pnand %p119, %p120
      %p122 = pneg %p121
      // Predicated region
      $region9: #{tpu_custom_call.1} parent=5 // pred_check
        _
      $region10: #{tpu_custom_call.1} parent=5 // pred_check_branch
        %124 = sbr.rel (%p121) target = $region12
      $region11: #{tpu_custom_call.1} parent=5 // pred_region
        %s125 = ssub.s32 %s22, 1
        // Predicated region
        $region13: #{tpu_custom_call.1} parent=11 // pred_check
          %p126 = pneg %p43
        $region14: #{tpu_custom_call.1} parent=11 // pred_check_branch
          %128 = sbr.rel (%p126) target = $region16
        $region15: #{tpu_custom_call.1} parent=11 // pred_region
          %130 = vsyncadd [#allocation6], 0
          %s131 = sshll.u32 %s1, 4
          %s132 = int_to_ptr.hbm [resolvable:$true] %s131
          %s133 = sshll.u32 [#allocation5], 4
          %s134 = int_to_ptr.vmem [resolvable:$true] %s133
          %139 = dma.hbm_to_vmem [thread:$0]  %s132, 384, %s134, [#allocation6], 128, 128, 8
        $region16: #{tpu_custom_call.1} parent=11 // pred_fallthru
          _
        // Predicated region
        $region17: #{tpu_custom_call.1} parent=11 // pred_check
          %p140 = pneg %p64
        $region18: #{tpu_custom_call.1} parent=11 // pred_check_branch
          %142 = sbr.rel (%p140) target = $region20
        $region19: #{tpu_custom_call.1} parent=11 // pred_region
          _
        $region20: #{tpu_custom_call.1} parent=11 // pred_fallthru
          _
        // Predicated region
        $region21: #{tpu_custom_call.1} parent=11 // pred_check
          %p143 = pneg %p85
        $region22: #{tpu_custom_call.1} parent=11 // pred_check_branch
          %145 = sbr.rel (%p143) target = $region24
        $region23: #{tpu_custom_call.1} parent=11 // pred_region
          _
        $region24: #{tpu_custom_call.1} parent=11 // pred_fallthru
          _
      $region12: #{tpu_custom_call.1} parent=5 // pred_fallthru
        _
      %p146 = scmp.lt.s32.totalorder %s22, 2
      // Predicated region
      $region25: #{tpu_custom_call.1} parent=5 // pred_check
        %p147 = pneg %p146
      $region26: #{tpu_custom_call.1} parent=5 // pred_check_branch
        %149 = sbr.rel (%p147) target = $region28
      $region27: #{tpu_custom_call.1} parent=5 // pred_region
        _
      $region28: #{tpu_custom_call.1} parent=5 // pred_fallthru
        _
      %p150 = scmp.le.s32.totalorder 1, %s22
      %p151 = scmp.lt.s32.totalorder %s22, 3
      %p152 = pnand %p150, %p151
      %p153 = pneg %p152
      // Predicated region
      $region29: #{tpu_custom_call.1} parent=5 // pred_check
        _
      $region30: #{tpu_custom_call.1} parent=5 // pred_check_branch
        %155 = sbr.rel (%p152) target = $region32
      $region31: #{tpu_custom_call.1} parent=5 // pred_region
        %s156 = ssub.s32 %s22, 1
        // Predicated region
        $region33: #{tpu_custom_call.1} parent=31 // pred_check
          %p157 = pneg %p43
        $region34: #{tpu_custom_call.1} parent=31 // pred_check_branch
          %159 = sbr.rel (%p157) target = $region36
        $region35: #{tpu_custom_call.1} parent=31 // pred_region
          %161 = dma.done [#allocation6], 384
        $region36: #{tpu_custom_call.1} parent=31 // pred_fallthru
          _
        %p162 = pneg %p43
        %p163 = pneg %p40
        %p164 = pneg %p64
        %p165 = pneg %p61
        %p166 = pneg %p85
        %p167 = pneg %p82
        %p168 = pneg %p111
        %p169 = pneg %p108
        %s170 = sand.u32 %s98, 1
        %s171 = scalar_lea.sflag [#allocation7], %s170
        %s172 = sand.u32 %s98, 1
        %s173 = smul.addr %s172, 8
        %s174 = scalar_lea.vmem [#allocation8], %s173
        %s175 = smul.u32 %s27, 8
        loop: start=0, step=1, limit=8
        $region37: #{tpu_custom_call.1} parent=31 // loop_pre_header
          _
        $region38: #{tpu_custom_call.1} parent=31 // loop_header
          %s177 = sphi 0, %s181
          %p178 = scmp.ge.s32.totalorder %s177, 8
        $region39: #{tpu_custom_call.1} parent=31 // loop_header_branch
          %180 = sbr.rel (%p178) target = $region43
        $region40: #{tpu_custom_call.1} parent=31 // loop_body
          %s182 = sadd.s32 %s175, %s177
          %s183 = sld [smem:[#allocation4 + %s182]]
          %p184 = scmp.gt.s32.totalorder %s183, 0
          %s185 = scalar_select %p184, %s183, 0
          %p186 = scmp.lt.s32.totalorder %s185, 23
          %s187 = scalar_select %p186, %s185, 23
          %s188 = scalar_lea.vmem [#allocation5], %s187
          %v189 = vld [vmem:[%s188] sm:$0x1]
          %s190 = scalar_lea.vmem [#allocation2], %s177
          %191 = vst [vmem:[%s190] sm:$0x1] %v189
        $region41: #{tpu_custom_call.1} parent=31 // loop_footer
          %s181 = sadd.s32 1, %s177
        $region42: #{tpu_custom_call.1} parent=31 // loop_footer_branch
          %176 = sbr.rel target = $region38
        $region43: #{tpu_custom_call.1} parent=31 // loop_exit
          _
        %v192 = vld [vmem:[#allocation2] sm:$0xff]
        %193 = vadd.xlane.f32.xlu0 %v192
        %v194 = vpop.xlane.xlu0 %193
        %v195 = vmul.f32 %v194, 0.03125
        %v196 = vmul.f32 %v192, %v192
        %197 = vadd.xlane.f32.xlu0 %v196
        %v198 = vpop.xlane.xlu0 %197
        %v199 = vmul.f32 %v198, 0.03125
        %v200 = vmul.f32 %v195, %v195
        %v201 = vsub.f32 %v199, %v200
        %v202 = vsub.f32 %v192, %v195
        %v203 = vadd.f32 %v201, 1e-05
        %v204 = vrsqrt.pop %v203
        %v205 = vmul.f32 %v204, %v203
        %v206 = vmul.f32 %v205, %v204
        %v207 = vmul.f32 0.5, %v206
        %v208 = vsub.f32 1.5, %v207
        %v209 = vmul.f32 %v204, %v208
        %vm210 = vweird.f32 %v203
        %vm211 = vweird.f32 %v204
        %vm212 = vmor %vm210, %vm211
        %v213 = vsel %vm212, %v204, %v209
        %v214 = vmul.f32 %v202, %v213
        %v215 = vld [vmem:[%s2] sm:$0x1]
        %v217 = vperm.slane %v215, 0
        %v219 = vmul.f32 %v214, %v217
        %v220 = vld [vmem:[%s3] sm:$0x1]
        %v222 = vperm.slane %v220, 0
        %v224 = vadd.f32 %v219, %v222
        %225 = vst [vmem:[%s174] sm:$0xff] %v224
        %s226 = sand.u32 %s98, 1
        %s227 = scalar_lea.sflag [#allocation7], %s226
        %s228 = sand.u32 %s98, 1
        %s229 = smul.addr %s228, 8
        %s230 = scalar_lea.vmem [#allocation8], %s229
        // Predicated region
        $region44: #{tpu_custom_call.1} parent=31 // pred_check
          %p231 = pneg %p108
        $region45: #{tpu_custom_call.1} parent=31 // pred_check_branch
          %233 = sbr.rel (%p231) target = $region47
        $region46: #{tpu_custom_call.1} parent=31 // pred_region
          %235 = vsyncadd %s227, 0
          %s236 = smul.addr %s27, 8
          %s237 = scalar_lea.hbm %s4, %s236
          %s239 = sshll.u32 %s230, 4
          %s240 = int_to_ptr.vmem [resolvable:$true] %s239
          %s241 = sshll.u32 %s237, 4
          %s242 = int_to_ptr.hbm [resolvable:$true] %s241
          %244 = dma.vmem_to_hbm [thread:$0]  %s240, 128, %s242, %s227
        $region47: #{tpu_custom_call.1} parent=31 // pred_fallthru
          _
      $region32: #{tpu_custom_call.1} parent=5 // pred_fallthru
        _
      %p245 = scmp.le.s32.totalorder 2, %s22
      // Predicated region
      $region48: #{tpu_custom_call.1} parent=5 // pred_check
        %p246 = pneg %p245
      $region49: #{tpu_custom_call.1} parent=5 // pred_check_branch
        %248 = sbr.rel (%p246) target = $region51
      $region50: #{tpu_custom_call.1} parent=5 // pred_region
        %s249 = ssub.s32 %s22, 2
        // Predicated region
        $region52: #{tpu_custom_call.1} parent=50 // pred_check
          %p250 = pneg %p114
        $region53: #{tpu_custom_call.1} parent=50 // pred_check_branch
          %252 = sbr.rel (%p250) target = $region55
        $region54: #{tpu_custom_call.1} parent=50 // pred_region
          %s253 = sand.u32 %s99, 1
          %s254 = scalar_lea.sflag [#allocation7], %s253
          %s255 = sand.u32 %s99, 1
          %s256 = smul.addr %s255, 8
          %s257 = scalar_lea.vmem [#allocation8], %s256
          %259 = dma.done %s254, 128
        $region55: #{tpu_custom_call.1} parent=50 // pred_fallthru
          _
      $region51: #{tpu_custom_call.1} parent=5 // pred_fallthru
        _
    $region6: #{tpu_custom_call.1} parent=1 // loop_footer
      %s26 = sadd.s32 1, %s22
    $region7: #{tpu_custom_call.1} parent=1 // loop_footer_branch
      %21 = sbr.rel target = $region3
    $region8: #{tpu_custom_call.1} parent=1 // loop_exit
      _
    %260 = vsyncpa [#allocation6], 1
    %s261 = scalar_lea.sflag [#allocation6], 1
    %262 = vsyncpa %s261, 1
    %263 = vsyncpa [#allocation7], 1
    %s264 = scalar_lea.sflag [#allocation7], 1
    %265 = vsyncpa %s264, 1

</llo_original>
